<compile_context>
chip_gen: v6e
topology: v6e:2x2x1
jax: 0.10.0
libtpu: 0.0.40
codegen_flags: <defaults>
</compile_context>

<pallas_src>
import functools
import math

import jax
import jax.numpy as jnp
from jax.experimental import pallas as pl
from jax.experimental.pallas import tpu as pltpu


def _round_up(x, m):
    return ((x + m - 1) // m) * m


def _ffn_kernel(x_ref, w1_ref, b1_ref, w2_ref, b2_ref, g_ref, beta_ref,
                o_ref, acc_ref, xbf_ref, *, n_k, d_true, d_pad):
    """One (row-tile i, d_ff-chunk k) grid step.

    x_ref:  (tm, d_pad) f32      w1_ref: (d_pad, tk) bf16   b1_ref: (1, tk) f32
    w2_ref: (tk, d_pad) bf16     b2/g/beta: (1, d_pad) f32  o_ref: (tm, d_pad)
    acc_ref: (tm, d_pad) f32 scratch   xbf_ref: (tm, d_pad) bf16 scratch
    """
    k = pl.program_id(1)

    # bf16 row tile for the MXU.  For multi-chunk reductions, cast once per
    # row tile into VMEM scratch and reuse (cheap vld per k instead of re-cast).
    if n_k == 1:
        x_bf = x_ref[...].astype(jnp.bfloat16)
    else:
        @pl.when(k == 0)
        def _():
            xbf_ref[...] = x_ref[...].astype(jnp.bfloat16)
        x_bf = xbf_ref[...]

    # Linear1 slice -> GELU (tanh approx, matches the PyTorch GELU module).
    h = jnp.dot(x_bf, w1_ref[...], preferred_element_type=jnp.float32)
    h = h + b1_ref[...]
    c_gelu = math.sqrt(2.0 / math.pi)
    h = 0.5 * h * (1.0 + jnp.tanh(c_gelu * (h + 0.044715 * h * h * h)))

    # Linear2 partial product for this d_ff chunk (fp32 accumulation).
    part = jnp.dot(h.astype(jnp.bfloat16), w2_ref[...],
                   preferred_element_type=jnp.float32)

    def epilogue(acc):
        # bias2 + residual + LayerNorm, all fp32.  Padded lanes of acc/x/b2 are
        # zero, so stats only need the lane count corrected / masked.
        y = acc + b2_ref[...] + x_ref[...].astype(jnp.float32)
        if d_pad == d_true:
            mean = jnp.mean(y, axis=-1, keepdims=True)
            cen = y - mean
            var = jnp.mean(cen * cen, axis=-1, keepdims=True)
        else:
            inv_d = 1.0 / float(d_true)
            mean = jnp.sum(y, axis=-1, keepdims=True) * inv_d
            lane = jax.lax.broadcasted_iota(jnp.int32, y.shape, 1)
            cen = jnp.where(lane < d_true, y - mean, 0.0)
            var = jnp.sum(cen * cen, axis=-1, keepdims=True) * inv_d
        y = cen * jax.lax.rsqrt(var + 1e-5)
        o_ref[...] = (y * g_ref[...] + beta_ref[...]).astype(o_ref.dtype)

    if n_k == 1:
        # Single-chunk fast path: no accumulator round-trip through VMEM.
        epilogue(part)
    else:
        @pl.when(k == 0)
        def _():
            acc_ref[...] = part

        @pl.when(k > 0)
        def _():
            acc_ref[...] += part

        @pl.when(k == n_k - 1)
        def _():
            epilogue(acc_ref[...])


def prepare_ffn_params(w1, b1, w2, b2, gamma, beta, *, tk_max=512):
    """One-time parameter prep: bf16 cast + lane/chunk zero-padding.

    Done once at setup (NOT per forward call) so the per-call path reads bf16
    weights straight from HBM with no extra cast kernels.
    w1: (d_model, d_ff), w2: (d_ff, d_model).
    """
    d_model, d_ff = w1.shape
    d_pad = _round_up(d_model, 128)                      # lane-align d_model
    tk = min(tk_max, _round_up(d_ff, 128))               # d_ff chunk, 128-mult
    f_pad = _round_up(d_ff, tk)                          # padded d_ff

    return {
        "w1": jnp.pad(w1.astype(jnp.bfloat16),
                      ((0, d_pad - d_model), (0, f_pad - d_ff))),
        "b1": jnp.pad(b1.astype(jnp.float32), (0, f_pad - d_ff)).reshape(1, f_pad),
        "w2": jnp.pad(w2.astype(jnp.bfloat16),
                      ((0, f_pad - d_ff), (0, d_pad - d_model))),
        "b2": jnp.pad(b2.astype(jnp.float32), (0, d_pad - d_model)).reshape(1, d_pad),
        "gamma": jnp.pad(gamma.astype(jnp.float32), (0, d_pad - d_model)).reshape(1, d_pad),
        "beta": jnp.pad(beta.astype(jnp.float32), (0, d_pad - d_model)).reshape(1, d_pad),
        "d_model": d_model,
        "d_ff": d_ff,
        "d_pad": d_pad,
        "tk": tk,
        "f_pad": f_pad,
    }


def poswise_ffn(x, params, *, tm_max=256):
    """x: (B, S, d_model) -> (B, S, d_model)."""
    B, S, d_model = x.shape
    assert d_model == params["d_model"]
    d_pad, tk, f_pad = params["d_pad"], params["tk"], params["f_pad"]
    n_k = f_pad // tk
    M = B * S

    # Balanced row tiling: minimize ragged-tail padding, keep tm a multiple of
    # 8 sublanes (and <= tm_max so blocks stay MXU/VMEM friendly).
    nm = pl.cdiv(M, tm_max)
    tm = _round_up(pl.cdiv(M, nm), 8)
    nm = pl.cdiv(M, tm)
    m_pad = nm * tm

    x2d = x.reshape(M, d_model)
    if m_pad != M or d_pad != d_model:
        x2d = jnp.pad(x2d, ((0, m_pad - M), (0, d_pad - d_model)))

    kernel = functools.partial(_ffn_kernel, n_k=n_k, d_true=d_model, d_pad=d_pad)

    # VMEM footprint estimate (double-buffered blocks + scratch); give headroom
    # but stay well under v7x's 64 MiB physical / v5e-v6e's 128 MiB.
    out_bytes = jnp.dtype(x.dtype).itemsize
    est = (2 * tm * d_pad * 4            # x tiles (f32)
           + 2 * d_pad * tk * 2          # w1 slices (bf16)
           + 2 * tk * 4                  # b1 slices
           + 2 * tk * d_pad * 2          # w2 slices (bf16)
           + 6 * d_pad * 4               # b2 / gamma / beta
           + 2 * tm * d_pad * out_bytes  # out tiles
           + tm * d_pad * 4              # acc scratch
           + tm * d_pad * 2)             # bf16 x scratch
    vmem_limit = int(min(96 * 1024 * 1024, max(32 * 1024 * 1024, 2 * est)))

    out2d = pl.pallas_call(
        kernel,
        out_shape=jax.ShapeDtypeStruct((m_pad, d_pad), x.dtype),
        grid_spec=pltpu.PrefetchScalarGridSpec(
            num_scalar_prefetch=0,
            grid=(nm, n_k),                              # reduction axis last
            in_specs=[
                pl.BlockSpec((tm, d_pad), lambda i, k: (i, 0)),   # x row tile
                pl.BlockSpec((d_pad, tk), lambda i, k: (0, k)),   # w1 chunk
                pl.BlockSpec((1, tk), lambda i, k: (0, k)),       # b1 chunk
                pl.BlockSpec((tk, d_pad), lambda i, k: (k, 0)),   # w2 chunk
                pl.BlockSpec((1, d_pad), lambda i, k: (0, 0)),    # b2
                pl.BlockSpec((1, d_pad), lambda i, k: (0, 0)),    # gamma
                pl.BlockSpec((1, d_pad), lambda i, k: (0, 0)),    # beta
            ],
            out_specs=pl.BlockSpec((tm, d_pad), lambda i, k: (i, 0)),
            scratch_shapes=[pltpu.VMEM((tm, d_pad), jnp.float32),   # fp32 acc
                            pltpu.VMEM((tm, d_pad), jnp.bfloat16)],  # bf16 x
        ),
        compiler_params=pltpu.CompilerParams(
            dimension_semantics=("parallel", "arbitrary"),
            vmem_limit_bytes=vmem_limit,
        ),
    )(x2d, params["w1"], params["b1"], params["w2"], params["b2"],
      params["gamma"], params["beta"])

    return out2d[:M, :d_model].reshape(B, S, d_model)


def _reference(x, w1, b1, w2, b2, gamma, beta):
    # Same math / operand dtypes as the kernel (bf16 matmul operands, fp32 acc).
    c = math.sqrt(2.0 / math.pi)
    h = jnp.dot(x.astype(jnp.bfloat16), w1.astype(jnp.bfloat16),
                preferred_element_type=jnp.float32) + b1
    h = 0.5 * h * (1.0 + jnp.tanh(c * (h + 0.044715 * h ** 3)))
    y = jnp.dot(h.astype(jnp.bfloat16), w2.astype(jnp.bfloat16),
                preferred_element_type=jnp.float32) + b2 + x.astype(jnp.float32)
    mean = jnp.mean(y, axis=-1, keepdims=True)
    var = jnp.mean((y - mean) ** 2, axis=-1, keepdims=True)
    return (y - mean) / jnp.sqrt(var + 1e-5) * gamma + beta


def _run_case(key, B, S, d_model, d_ff, tm_max=256):
    kx, k1, k2, k3, k4, k5, k6 = jax.random.split(key, 7)
    x = jax.random.normal(kx, (B, S, d_model), dtype=jnp.float32)
    lim1 = 1.0 / math.sqrt(d_model)
    lim2 = 1.0 / math.sqrt(d_ff)
    w1 = jax.random.uniform(k1, (d_model, d_ff), minval=-lim1, maxval=lim1,
                            dtype=jnp.float32)
    b1 = jax.random.uniform(k2, (d_ff,), minval=-lim1, maxval=lim1,
                            dtype=jnp.float32)
    w2 = jax.random.uniform(k3, (d_ff, d_model), minval=-lim2, maxval=lim2,
                            dtype=jnp.float32)
    b2 = jax.random.uniform(k4, (d_model,), minval=-lim2, maxval=lim2,
                            dtype=jnp.float32)
    gamma = 1.0 + 0.1 * jax.random.normal(k5, (d_model,), dtype=jnp.float32)
    beta = 0.1 * jax.random.normal(k6, (d_model,), dtype=jnp.float32)

    # One-time parameter prep (bf16 cast + padding) — outside the call path.
    params = prepare_ffn_params(w1, b1, w2, b2, gamma, beta)

    out = poswise_ffn(x, params, tm_max=tm_max)
    jax.block_until_ready(out)

    ref = _reference(x, w1, b1, w2, b2, gamma, beta)
    assert out.shape == (B, S, d_model)
    max_diff = jnp.max(jnp.abs(out - ref))
    assert jnp.allclose(out, ref, atol=1e-2, rtol=1e-2), (
        f"mismatch vs reference, max abs diff {max_diff}")
    return out


if __name__ == "__main__":
    key = jax.random.PRNGKey(0)
    k1, k2 = jax.random.split(key)

    # Small demo shape (matches the module spec): d_model=32 exercises the
    # lane-padding + masked-LayerNorm path and the single-chunk fast path.
    _run_case(k1, B=2, S=8, d_model=32, d_ff=64)

    # Larger shape exercising balanced row tiling (M=272 -> tm=136, nm=2) and
    # the streamed d_ff reduction grid axis (d_ff=1024, tk=512, n_k=2).
    _run_case(k2, B=2, S=136, d_model=128, d_ff=1024)

    print("KERNEL_OK")
</pallas_src>

<mosaic_0001>
module attributes {stable_mosaic.version = 11 : i64} {
  func.func @_ffn_kernel(%arg0: i32, %arg1: i32, %arg2: memref<16x128xf32, #tpu.memory_space<vmem>>, %arg3: memref<128x128xbf16, #tpu.memory_space<vmem>>, %arg4: memref<1x128xf32, #tpu.memory_space<vmem>>, %arg5: memref<128x128xbf16, #tpu.memory_space<vmem>>, %arg6: memref<1x128xf32, #tpu.memory_space<vmem>>, %arg7: memref<1x128xf32, #tpu.memory_space<vmem>>, %arg8: memref<1x128xf32, #tpu.memory_space<vmem>>, %arg9: memref<16x128xf32, #tpu.memory_space<vmem>>, %arg10: memref<16x128xf32, #tpu.memory_space<vmem>>, %arg11: memref<16x128xbf16, #tpu.memory_space<vmem>>) attributes {dimension_semantics = [#tpu.dimension_semantics<parallel>, #tpu.dimension_semantics<arbitrary>], iteration_bounds = array<i64: 1, 1>, scalar_prefetch = 0 : i64, scratch_operands = 2 : i64, tpu.core_type = #tpu.core_type<tc>, window_params = [{transform_indices = @transform_0, window_bounds = array<i64: 16, 128>}, {transform_indices = @transform_1, window_bounds = array<i64: 128, 128>}, {transform_indices = @transform_2, window_bounds = array<i64: 1, 128>}, {transform_indices = @transform_3, window_bounds = array<i64: 128, 128>}, {pipeline_mode = #tpu.pipeline_mode<synchronous>, transform_indices = @transform_4, window_bounds = array<i64: 1, 128>}, {pipeline_mode = #tpu.pipeline_mode<synchronous>, transform_indices = @transform_5, window_bounds = array<i64: 1, 128>}, {pipeline_mode = #tpu.pipeline_mode<synchronous>, transform_indices = @transform_6, window_bounds = array<i64: 1, 128>}, {transform_indices = @transform_7, window_bounds = array<i64: 16, 128>}]} {
    %c0 = arith.constant 0 : index
    %c0_0 = arith.constant 0 : index
    %0 = vector.load %arg2[%c0, %c0_0] : memref<16x128xf32, #tpu.memory_space<vmem>>, vector<16x128xf32>
    %1 = arith.truncf %0 : vector<16x128xf32> to vector<16x128xbf16>
    %c0_1 = arith.constant 0 : index
    %c0_2 = arith.constant 0 : index
    %2 = vector.load %arg3[%c0_1, %c0_2] : memref<128x128xbf16, #tpu.memory_space<vmem>>, vector<128x128xbf16>
    %cst = arith.constant dense<0.000000e+00> : vector<16x128xf32>
    %3 = tpu.matmul %1, %2, %cst {dimension_numbers = #tpu.dot_dimension_numbers<[1], [0], [0], [1], [0, 0, 1, 1], [], []>} : vector<16x128xbf16>, vector<128x128xbf16>, vector<16x128xf32> -> vector<16x128xf32>
    %c0_3 = arith.constant 0 : index
    %c0_4 = arith.constant 0 : index
    %4 = vector.load %arg4[%c0_3, %c0_4] : memref<1x128xf32, #tpu.memory_space<vmem>>, vector<1x128xf32>
    %5 = vector.broadcast %4 : vector<1x128xf32> to vector<16x128xf32>
    %6 = arith.addf %3, %5 : vector<16x128xf32>
    %cst_5 = arith.constant 5.000000e-01 : f32
    %7 = vector.broadcast %cst_5 : f32 to vector<16x128xf32>
    %8 = arith.mulf %7, %6 : vector<16x128xf32>
    %cst_6 = arith.constant 4.471500e-02 : f32
    %9 = vector.broadcast %cst_6 : f32 to vector<16x128xf32>
    %10 = arith.mulf %9, %6 : vector<16x128xf32>
    %11 = arith.mulf %10, %6 : vector<16x128xf32>
    %12 = arith.mulf %11, %6 : vector<16x128xf32>
    %13 = arith.addf %6, %12 : vector<16x128xf32>
    %cst_7 = arith.constant 0.797884583 : f32
    %14 = vector.broadcast %cst_7 : f32 to vector<16x128xf32>
    %15 = arith.mulf %14, %13 : vector<16x128xf32>
    %16 = math.tanh %15 : vector<16x128xf32>
    %cst_8 = arith.constant 1.000000e+00 : f32
    %17 = vector.broadcast %cst_8 : f32 to vector<16x128xf32>
    %18 = arith.addf %17, %16 : vector<16x128xf32>
    %19 = arith.mulf %8, %18 : vector<16x128xf32>
    %20 = arith.truncf %19 : vector<16x128xf32> to vector<16x128xbf16>
    %c0_9 = arith.constant 0 : index
    %c0_10 = arith.constant 0 : index
    %21 = vector.load %arg5[%c0_9, %c0_10] : memref<128x128xbf16, #tpu.memory_space<vmem>>, vector<128x128xbf16>
    %cst_11 = arith.constant dense<0.000000e+00> : vector<16x128xf32>
    %22 = tpu.matmul %20, %21, %cst_11 {dimension_numbers = #tpu.dot_dimension_numbers<[1], [0], [0], [1], [0, 0, 1, 1], [], []>} : vector<16x128xbf16>, vector<128x128xbf16>, vector<16x128xf32> -> vector<16x128xf32>
    %c0_12 = arith.constant 0 : index
    %c0_13 = arith.constant 0 : index
    %23 = vector.load %arg6[%c0_12, %c0_13] : memref<1x128xf32, #tpu.memory_space<vmem>>, vector<1x128xf32>
    %24 = vector.broadcast %23 : vector<1x128xf32> to vector<16x128xf32>
    %25 = arith.addf %22, %24 : vector<16x128xf32>
    %c0_14 = arith.constant 0 : index
    %c0_15 = arith.constant 0 : index
    %26 = vector.load %arg2[%c0_14, %c0_15] : memref<16x128xf32, #tpu.memory_space<vmem>>, vector<16x128xf32>
    %27 = arith.addf %25, %26 : vector<16x128xf32>
    %cst_16 = arith.constant dense<0.000000e+00> : vector<16xf32>
    %28 = vector.multi_reduction <add>, %27, %cst_16 [1] : vector<16x128xf32> to vector<16xf32>
    %29 = vector.shape_cast %28 : vector<16xf32> to vector<16x1xf32>
    %cst_17 = arith.constant 3.125000e-02 : f32
    %30 = vector.broadcast %cst_17 : f32 to vector<16x1xf32>
    %31 = arith.mulf %29, %30 : vector<16x1xf32>
    %32 = tpu.iota {dimensions = array<i32: 1>} : vector<16x128xi32>
    %c32_i32 = arith.constant 32 : i32
    %33 = vector.broadcast %c32_i32 : i32 to vector<16x128xi32>
    %34 = arith.cmpi slt, %32, %33 : vector<16x128xi32>
    %35 = vector.broadcast %31 : vector<16x1xf32> to vector<16x128xf32>
    %36 = arith.subf %27, %35 : vector<16x128xf32>
    %cst_18 = arith.constant 0.000000e+00 : f32
    %37 = vector.broadcast %cst_18 : f32 to vector<16x128xf32>
    %38 = arith.select %34, %36, %37 : vector<16x128xi1>, vector<16x128xf32>
    %39 = arith.mulf %38, %38 : vector<16x128xf32>
    %cst_19 = arith.constant dense<0.000000e+00> : vector<16xf32>
    %40 = vector.multi_reduction <add>, %39, %cst_19 [1] : vector<16x128xf32> to vector<16xf32>
    %41 = vector.shape_cast %40 : vector<16xf32> to vector<16x1xf32>
    %cst_20 = arith.constant 3.125000e-02 : f32
    %42 = vector.broadcast %cst_20 : f32 to vector<16x1xf32>
    %43 = arith.mulf %41, %42 : vector<16x1xf32>
    %cst_21 = arith.constant 9.99999974E-6 : f32
    %44 = vector.broadcast %cst_21 : f32 to vector<16x1xf32>
    %45 = arith.addf %43, %44 : vector<16x1xf32>
    %46 = math.rsqrt %45 : vector<16x1xf32>
    %47 = vector.broadcast %46 : vector<16x1xf32> to vector<16x128xf32>
    %48 = arith.mulf %38, %47 : vector<16x128xf32>
    %c0_22 = arith.constant 0 : index
    %c0_23 = arith.constant 0 : index
    %49 = vector.load %arg7[%c0_22, %c0_23] : memref<1x128xf32, #tpu.memory_space<vmem>>, vector<1x128xf32>
    %50 = vector.broadcast %49 : vector<1x128xf32> to vector<16x128xf32>
    %51 = arith.mulf %48, %50 : vector<16x128xf32>
    %c0_24 = arith.constant 0 : index
    %c0_25 = arith.constant 0 : index
    %52 = vector.load %arg8[%c0_24, %c0_25] : memref<1x128xf32, #tpu.memory_space<vmem>>, vector<1x128xf32>
    %53 = vector.broadcast %52 : vector<1x128xf32> to vector<16x128xf32>
    %54 = arith.addf %51, %53 : vector<16x128xf32>
    %c0_26 = arith.constant 0 : index
    %c0_27 = arith.constant 0 : index
    %55 = vector.load %arg9[%c0_26, %c0_27] : memref<16x128xf32, #tpu.memory_space<vmem>>, vector<16x128xf32>
    tpu.vector_store %arg9[%c0_26, %c0_27], %54 {strides = array<i32>} : memref<16x128xf32, #tpu.memory_space<vmem>>, vector<16x128xf32>,
    return
  }
  func.func @transform_0(%arg0: i32, %arg1: i32) -> (i32, i32) {
    %c0_i32 = arith.constant 0 : i32
    %c0_i32_0 = arith.constant 0 : i32
    return %arg0, %c0_i32 : i32, i32
  }
  func.func @transform_1(%arg0: i32, %arg1: i32) -> (i32, i32) {
    %c0_i32 = arith.constant 0 : i32
    %c0_i32_0 = arith.constant 0 : i32
    return %c0_i32, %arg1 : i32, i32
  }
  func.func @transform_2(%arg0: i32, %arg1: i32) -> (i32, i32) {
    %c0_i32 = arith.constant 0 : i32
    %c0_i32_0 = arith.constant 0 : i32
    return %c0_i32, %arg1 : i32, i32
  }
  func.func @transform_3(%arg0: i32, %arg1: i32) -> (i32, i32) {
    %c0_i32 = arith.constant 0 : i32
    %c0_i32_0 = arith.constant 0 : i32
    return %arg1, %c0_i32 : i32, i32
  }
  func.func @transform_4(%arg0: i32, %arg1: i32) -> (i32, i32) {
    %c0_i32 = arith.constant 0 : i32
    %c0_i32_0 = arith.constant 0 : i32
    %c0_i32_1 = arith.constant 0 : i32
    return %c0_i32, %c0_i32_0 : i32, i32
  }
  func.func @transform_5(%arg0: i32, %arg1: i32) -> (i32, i32) {
    %c0_i32 = arith.constant 0 : i32
    %c0_i32_0 = arith.constant 0 : i32
    %c0_i32_1 = arith.constant 0 : i32
    return %c0_i32, %c0_i32_0 : i32, i32
  }
  func.func @transform_6(%arg0: i32, %arg1: i32) -> (i32, i32) {
    %c0_i32 = arith.constant 0 : i32
    %c0_i32_0 = arith.constant 0 : i32
    %c0_i32_1 = arith.constant 0 : i32
    return %c0_i32, %c0_i32_0 : i32, i32
  }
  func.func @transform_7(%arg0: i32, %arg1: i32) -> (i32, i32) {
    %c0_i32 = arith.constant 0 : i32
    %c0_i32_0 = arith.constant 0 : i32
    return %arg0, %c0_i32 : i32, i32
  }
}

</mosaic_0001>

<llo_original>
// kernel: tpu_custom_call.1
$region0: #{tpu_custom_call.1}
  #allocation0 [shape = 'u32[]', space=smem, size = 0x4, offset = 0x4, fixed_abs, tag = 'smem constant byte address 0x4 - core index']
  #allocation1 [shape = 'u32[144,128]{1,0:T(1,128)}', space=vmem, size = 0x12000, scoped, tag = 'internal scratch']
  #allocation2 [shape = 'f32[16,128]{1,0:T(8,128)}', space=vmem, size = 0x2000, scoped, tag = 'scratch operand']
  #allocation3 [shape = 'bf16[16,128]{1,0:T(8,128)(2,1)}', space=vmem, size = 0x1000, scoped, tag = 'scratch operand']
  %s0 = inlined_call_operand.hbm [shape: f32[16,128], index: 0, kind: input, shape index: {}]
  %s1 = inlined_call_operand.hbm [shape: bf16[128,128], index: 1, kind: input, shape index: {}]
  %s2 = inlined_call_operand.vmem [shape: f32[1,128], index: 2, kind: input, shape index: {}]
  %s3 = inlined_call_operand.hbm [shape: bf16[128,128], index: 3, kind: input, shape index: {}]
  %s4 = inlined_call_operand.vmem [shape: f32[1,128], index: 4, kind: input, shape index: {}]
  %s5 = inlined_call_operand.vmem [shape: f32[1,128], index: 5, kind: input, shape index: {}]
  %s6 = inlined_call_operand.vmem [shape: f32[1,128], index: 6, kind: input, shape index: {}]
  %s7 = inlined_call_operand.hbm [shape: f32[16,128], index: 7, kind: output, shape index: {}]
  %s8 = sld [smem:[#allocation0]]
  $region50: #{tpu_custom_call.1} parent=0
    _
  %s10 = ssub.s32 1, %s8
  %s11 = scalar_select 0, %s10, %s8
  $region1: #{tpu_custom_call.1} parent=0
    #allocation4 [shape = 'u8[8192]{0}', space=vmem, size = 0x2000, scoped, tag = 'input window, operand 0, single buffered']
    #allocation5 [shape = 's32[1]{0}', space=sflag, size = 0x4, scoped, tag = 'scoped memory for tpu_custom_call.1']
    #allocation6 [shape = 's32[1]{0}', space=sflag, size = 0x4, scoped, tag = 'scoped memory for tpu_custom_call.1']
    #allocation7 [shape = 'u8[32768]{0}', space=vmem, size = 0x8000, scoped, tag = 'input window, operand 1, single buffered']
    #allocation8 [shape = 's32[1]{0}', space=sflag, size = 0x4, scoped, tag = 'scoped memory for tpu_custom_call.1']
    #allocation9 [shape = 'u8[32768]{0}', space=vmem, size = 0x8000, scoped, tag = 'input window, operand 3, single buffered']
    #allocation10 [shape = 'u8[8192]{0}', space=vmem, size = 0x2000, scoped, tag = 'output window, operand 0, single buffered']
    %12 = vsyncpa [#allocation5], 0
    %13 = vsyncpa [#allocation8], 0
    %14 = vsyncpa [#allocation6], 0
    // Predicated region
    $region2: #{tpu_custom_call.1} parent=1 // pred_check
      _
    $region3: #{tpu_custom_call.1} parent=1 // pred_check_branch
      %16 = sbr.rel (0) target = $region5
    $region4: #{tpu_custom_call.1} parent=1 // pred_region
      %s18 = ssub.s32 256, 256
      %19 = vsyncadd [#allocation5], %s18
      %s20 = sshll.u32 [#allocation4], 4
      %s21 = int_to_ptr.vmem [resolvable:$true] %s20
      %26 = dma.hbm_to_vmem [thread:$0]  %s0, 256, %s21, [#allocation5], 128, 128, 8
    $region5: #{tpu_custom_call.1} parent=1 // pred_fallthru
      _
    // Predicated region
    $region6: #{tpu_custom_call.1} parent=1 // pred_check
      _
    $region7: #{tpu_custom_call.1} parent=1 // pred_check_branch
      %28 = sbr.rel (0) target = $region9
    $region8: #{tpu_custom_call.1} parent=1 // pred_region
      %s30 = ssub.s32 1024, 1024
      %31 = vsyncadd [#allocation8], %s30
      %s32 = sshll.u32 [#allocation7], 4
      %s33 = int_to_ptr.vmem [resolvable:$true] %s32
      %38 = dma.hbm_to_vmem [thread:$0]  %s1, 1024, %s33, [#allocation8], 64, 64, 4
    $region9: #{tpu_custom_call.1} parent=1 // pred_fallthru
      _
    // Predicated region
    $region10: #{tpu_custom_call.1} parent=1 // pred_check
      _
    $region11: #{tpu_custom_call.1} parent=1 // pred_check_branch
      %40 = sbr.rel (0) target = $region13
    $region12: #{tpu_custom_call.1} parent=1 // pred_region
      _
    $region13: #{tpu_custom_call.1} parent=1 // pred_fallthru
      _
    // Predicated region
    $region14: #{tpu_custom_call.1} parent=1 // pred_check
      _
    $region15: #{tpu_custom_call.1} parent=1 // pred_check_branch
      %42 = sbr.rel (0) target = $region17
    $region16: #{tpu_custom_call.1} parent=1 // pred_region
      %s44 = ssub.s32 1024, 1024
      %45 = vsyncadd [#allocation8], %s44
      %s46 = sshll.u32 [#allocation9], 4
      %s47 = int_to_ptr.vmem [resolvable:$true] %s46
      %52 = dma.hbm_to_vmem [thread:$0]  %s3, 1024, %s47, [#allocation8], 64, 64, 4
    $region17: #{tpu_custom_call.1} parent=1 // pred_fallthru
      _
    // Predicated region
    $region18: #{tpu_custom_call.1} parent=1 // pred_check
      _
    $region19: #{tpu_custom_call.1} parent=1 // pred_check_branch
      %54 = sbr.rel (0) target = $region21
    $region20: #{tpu_custom_call.1} parent=1 // pred_region
      _
    $region21: #{tpu_custom_call.1} parent=1 // pred_fallthru
      _
    // Predicated region
    $region22: #{tpu_custom_call.1} parent=1 // pred_check
      _
    $region23: #{tpu_custom_call.1} parent=1 // pred_check_branch
      %56 = sbr.rel (0) target = $region25
    $region24: #{tpu_custom_call.1} parent=1 // pred_region
      _
    $region25: #{tpu_custom_call.1} parent=1 // pred_fallthru
      _
    // Predicated region
    $region26: #{tpu_custom_call.1} parent=1 // pred_check
      _
    $region27: #{tpu_custom_call.1} parent=1 // pred_check_branch
      %58 = sbr.rel (0) target = $region29
    $region28: #{tpu_custom_call.1} parent=1 // pred_region
      _
    $region29: #{tpu_custom_call.1} parent=1 // pred_fallthru
      _
    // Predicated region
    $region30: #{tpu_custom_call.1} parent=1 // pred_check
      _
    $region31: #{tpu_custom_call.1} parent=1 // pred_check_branch
      %60 = sbr.rel (0) target = $region33
    $region32: #{tpu_custom_call.1} parent=1 // pred_region
      %61 = dma.done [#allocation5], 256
    $region33: #{tpu_custom_call.1} parent=1 // pred_fallthru
      _
    // Predicated region
    $region34: #{tpu_custom_call.1} parent=1 // pred_check
      _
    $region35: #{tpu_custom_call.1} parent=1 // pred_check_branch
      %63 = sbr.rel (0) target = $region37
    $region36: #{tpu_custom_call.1} parent=1 // pred_region
      %64 = dma.done [#allocation8], 1024
    $region37: #{tpu_custom_call.1} parent=1 // pred_fallthru
      _
    // Predicated region
    $region38: #{tpu_custom_call.1} parent=1 // pred_check
      _
    $region39: #{tpu_custom_call.1} parent=1 // pred_check_branch
      %66 = sbr.rel (0) target = $region41
    $region40: #{tpu_custom_call.1} parent=1 // pred_region
      %67 = dma.done [#allocation8], 1024
    $region41: #{tpu_custom_call.1} parent=1 // pred_fallthru
      _
    %v69 = vld [vmem:[#allocation4] sm:$0xff]
    %v70 = vld [vmem:[#allocation4 + $0x8] sm:$0xff]
    %v71 = vpack.c.bf16 %v70, %v69
    %v72 = vld [vmem:[#allocation7] sm:$0xf]
    %v73 = vld [vmem:[#allocation7 + $0x4] sm:$0xf]
    %v74 = vld [vmem:[#allocation7 + $0x8] sm:$0xf]
    %v75 = vld [vmem:[#allocation7 + $0xc] sm:$0xf]
    %v76 = vld [vmem:[#allocation7 + $0x10] sm:$0xf]
    %v77 = vld [vmem:[#allocation7 + $0x14] sm:$0xf]
    %v78 = vld [vmem:[#allocation7 + $0x18] sm:$0xf]
    %v79 = vld [vmem:[#allocation7 + $0x1c] sm:$0xf]
    %v80 = vld [vmem:[#allocation7 + $0x20] sm:$0xf]
    %v81 = vld [vmem:[#allocation7 + $0x24] sm:$0xf]
    %v82 = vld [vmem:[#allocation7 + $0x28] sm:$0xf]
    %v83 = vld [vmem:[#allocation7 + $0x2c] sm:$0xf]
    %v84 = vld [vmem:[#allocation7 + $0x30] sm:$0xf]
    %v85 = vld [vmem:[#allocation7 + $0x34] sm:$0xf]
    %v86 = vld [vmem:[#allocation7 + $0x38] sm:$0xf]
    %v87 = vld [vmem:[#allocation7 + $0x3c] sm:$0xf]
    %v88 = vld [vmem:[%s2] sm:$0x1]
    %v90 = vlaneseq
    %v91 = vshrl.u32 %v90, 7
    %v92 = vsub.s32 0, %v91
    %v93 = vrot.slane %v88, %v92
    %v111 = vunpack.c.l.b16 %v72
    %v112 = vunpack.c.l.b16 %v73
    %v113 = vunpack.c.l.b16 %v74
    %v114 = vunpack.c.l.b16 %v75
    %v115 = vunpack.c.l.b16 %v76
    %v116 = vunpack.c.l.b16 %v77
    %v117 = vunpack.c.l.b16 %v78
    %v118 = vunpack.c.l.b16 %v79
    %v119 = vunpack.c.l.b16 %v80
    %v120 = vunpack.c.l.b16 %v81
    %v121 = vunpack.c.l.b16 %v82
    %v122 = vunpack.c.l.b16 %v83
    %v123 = vunpack.c.l.b16 %v84
    %v124 = vunpack.c.l.b16 %v85
    %v125 = vunpack.c.l.b16 %v86
    %v126 = vunpack.c.l.b16 %v87
    %v127 = vpack.c.b16 %v112, %v111
    %v128 = vpack.c.b16 %v114, %v113
    %v129 = vpack.c.b16 %v116, %v115
    %v130 = vpack.c.b16 %v118, %v117
    %v131 = vpack.c.b16 %v120, %v119
    %v132 = vpack.c.b16 %v122, %v121
    %v133 = vpack.c.b16 %v124, %v123
    %v134 = vpack.c.b16 %v126, %v125
    %143 = vmatprep.subr.bf16.mxu0 0
    %144 = vmatpush1.bf16.msra.mxu0 %v134
    %145 = vmatprep.subr.bf16.mxu0 0
    %146 = vmatpush1.bf16.msra.mxu0 %v133
    %147 = vmatprep.subr.bf16.mxu0 0
    %148 = vmatpush1.bf16.msra.mxu0 %v132
    %149 = vmatprep.subr.bf16.mxu0 0
    %150 = vmatpush1.bf16.msra.mxu0 %v131
    %151 = vmatprep.subr.bf16.mxu0 0
    %152 = vmatpush1.bf16.msra.mxu0 %v130
    %153 = vmatprep.subr.bf16.mxu0 0
    %154 = vmatpush1.bf16.msra.mxu0 %v129
    %155 = vmatprep.subr.bf16.mxu0 0
    %156 = vmatpush1.bf16.msra.mxu0 %v128
    %157 = vmatprep.subr.bf16.mxu0 0
    %158 = vmatpush1.bf16.msra.mxu0 %v127
    %159 = vmatprep.subr.bf16.mxu0 0
    %160 = vmatpush2.bf16.msra.mxu0 0
    %161 = vmatprep.subr.bf16.mxu0 0
    %162 = vmatpush2.bf16.msra.mxu0 0
    %163 = vmatprep.subr.bf16.mxu0 0
    %164 = vmatpush2.bf16.msra.mxu0 0
    %165 = vmatprep.subr.bf16.mxu0 0
    %166 = vmatpush2.bf16.msra.mxu0 0
    %167 = vmatprep.subr.bf16.mxu0 0
    %168 = vmatpush2.bf16.msra.mxu0 0
    %169 = vmatprep.subr.bf16.mxu0 0
    %170 = vmatpush2.bf16.msra.mxu0 0
    %171 = vmatprep.subr.bf16.mxu0 0
    %172 = vmatpush2.bf16.msra.mxu0 0
    %173 = vmatprep.subr.bf16.mxu0 0
    %174 = vmatpush2.bf16.msra.mxu0 0
    %175 = vmatprep.mubr.bf16.mxu0 0
    %176 = vmatmul.mubr.bf16.gmra.mxu0 %v71
    %v177 = vpop.f32.mrf.mxu0
    %v178 = vadd.f32 %v93, %v177
    %v179 = vpop.f32.mrf.mxu0
    %v180 = vpop.f32.mrf.mxu0
    %v181 = vadd.f32 %v93, %v180
    %v182 = vpop.f32.mrf.mxu0
    %183 = vdwg.mxu0
    %v184 = vmul.f32 %v178, 0.5
    %v185 = vmul.f32 %v181, 0.5
    %v186 = vmul.f32 %v178, 0.044715
    %v187 = vmul.f32 %v181, 0.044715
    %v188 = vmul.f32 %v186, %v178
    %v189 = vmul.f32 %v187, %v181
    %v190 = vmul.f32 %v188, %v178
    %v191 = vmul.f32 %v189, %v181
    %v192 = vadd.f32 %v178, %v190
    %v193 = vadd.f32 %v181, %v191
    %v194 = vmul.f32 %v192, 0.7978846
    %v195 = vmul.f32 %v193, 0.7978846
    %v196 = vtanh.pop %v194
    %v197 = vtanh.pop %v195
    %v198 = vadd.f32 %v196, 1.0
    %v199 = vadd.f32 %v197, 1.0
    %v200 = vmul.f32 %v184, %v198
    %v201 = vmul.f32 %v185, %v199
    %v202 = vpack.c.bf16 %v201, %v200
    %v203 = vld [vmem:[#allocation9] sm:$0xf]
    %v204 = vld [vmem:[#allocation9 + $0x4] sm:$0xf]
    %v205 = vld [vmem:[#allocation9 + $0x8] sm:$0xf]
    %v206 = vld [vmem:[#allocation9 + $0xc] sm:$0xf]
    %v207 = vld [vmem:[#allocation9 + $0x10] sm:$0xf]
    %v208 = vld [vmem:[#allocation9 + $0x14] sm:$0xf]
    %v209 = vld [vmem:[#allocation9 + $0x18] sm:$0xf]
    %v210 = vld [vmem:[#allocation9 + $0x1c] sm:$0xf]
    %v211 = vld [vmem:[#allocation9 + $0x20] sm:$0xf]
    %v212 = vld [vmem:[#allocation9 + $0x24] sm:$0xf]
    %v213 = vld [vmem:[#allocation9 + $0x28] sm:$0xf]
    %v214 = vld [vmem:[#allocation9 + $0x2c] sm:$0xf]
    %v215 = vld [vmem:[#allocation9 + $0x30] sm:$0xf]
    %v216 = vld [vmem:[#allocation9 + $0x34] sm:$0xf]
    %v217 = vld [vmem:[#allocation9 + $0x38] sm:$0xf]
    %v218 = vld [vmem:[#allocation9 + $0x3c] sm:$0xf]
    %v219 = vld [vmem:[%s4] sm:$0x1]
    %v221 = vlaneseq
    %v222 = vshrl.u32 %v221, 7
    %v223 = vsub.s32 0, %v222
    %v224 = vrot.slane %v219, %v223
    %v242 = vunpack.c.l.b16 %v203
    %v243 = vunpack.c.l.b16 %v204
    %v244 = vunpack.c.l.b16 %v205
    %v245 = vunpack.c.l.b16 %v206
    %v246 = vunpack.c.l.b16 %v207
    %v247 = vunpack.c.l.b16 %v208
    %v248 = vunpack.c.l.b16 %v209
    %v249 = vunpack.c.l.b16 %v210
    %v250 = vunpack.c.l.b16 %v211
    %v251 = vunpack.c.l.b16 %v212
    %v252 = vunpack.c.l.b16 %v213
    %v253 = vunpack.c.l.b16 %v214
    %v254 = vunpack.c.l.b16 %v215
    %v255 = vunpack.c.l.b16 %v216
    %v256 = vunpack.c.l.b16 %v217
    %v257 = vunpack.c.l.b16 %v218
    %v258 = vpack.c.b16 %v243, %v242
    %v259 = vpack.c.b16 %v245, %v244
    %v260 = vpack.c.b16 %v247, %v246
    %v261 = vpack.c.b16 %v249, %v248
    %v262 = vpack.c.b16 %v251, %v250
    %v263 = vpack.c.b16 %v253, %v252
    %v264 = vpack.c.b16 %v255, %v254
    %v265 = vpack.c.b16 %v257, %v256
    %274 = vmatprep.subr.bf16.mxu0 0
    %275 = vmatpush1.bf16.msra.mxu0 %v265
    %276 = vmatprep.subr.bf16.mxu0 0
    %277 = vmatpush1.bf16.msra.mxu0 %v264
    %278 = vmatprep.subr.bf16.mxu0 0
    %279 = vmatpush1.bf16.msra.mxu0 %v263
    %280 = vmatprep.subr.bf16.mxu0 0
    %281 = vmatpush1.bf16.msra.mxu0 %v262
    %282 = vmatprep.subr.bf16.mxu0 0
    %283 = vmatpush1.bf16.msra.mxu0 %v261
    %284 = vmatprep.subr.bf16.mxu0 0
    %285 = vmatpush1.bf16.msra.mxu0 %v260
    %286 = vmatprep.subr.bf16.mxu0 0
    %287 = vmatpush1.bf16.msra.mxu0 %v259
    %288 = vmatprep.subr.bf16.mxu0 0
    %289 = vmatpush1.bf16.msra.mxu0 %v258
    %290 = vmatprep.subr.bf16.mxu0 0
    %291 = vmatpush2.bf16.msra.mxu0 0
    %292 = vmatprep.subr.bf16.mxu0 0
    %293 = vmatpush2.bf16.msra.mxu0 0
    %294 = vmatprep.subr.bf16.mxu0 0
    %295 = vmatpush2.bf16.msra.mxu0 0
    %296 = vmatprep.subr.bf16.mxu0 0
    %297 = vmatpush2.bf16.msra.mxu0 0
    %298 = vmatprep.subr.bf16.mxu0 0
    %299 = vmatpush2.bf16.msra.mxu0 0
    %300 = vmatprep.subr.bf16.mxu0 0
    %301 = vmatpush2.bf16.msra.mxu0 0
    %302 = vmatprep.subr.bf16.mxu0 0
    %303 = vmatpush2.bf16.msra.mxu0 0
    %304 = vmatprep.subr.bf16.mxu0 0
    %305 = vmatpush2.bf16.msra.mxu0 0
    %306 = vmatprep.mubr.bf16.mxu0 0
    %307 = vmatmul.mubr.bf16.gmra.mxu0 %v202
    %v308 = vpop.f32.mrf.mxu0
    %v309 = vadd.f32 %v224, %v308
    %v310 = vpop.f32.mrf.mxu0
    %v311 = vpop.f32.mrf.mxu0
    %v312 = vadd.f32 %v224, %v311
    %v313 = vpop.f32.mrf.mxu0
    %314 = vdwg.mxu0
    %v315 = vadd.f32 %v309, %v69
    %v316 = vadd.f32 %v312, %v70
    %317 = vadd.xlane.f32.xlu0 %v315
    %v318 = vpop.xlane.xlu0 %317
    %319 = vadd.xlane.f32.xlu0 %v316
    %v320 = vpop.xlane.xlu0 %319
    %v321 = vmul.f32 %v318, 0.03125
    %v322 = vmul.f32 %v320, 0.03125
    %v323 = vlaneseq
    %v324 = vand.u32 %v323, 127
    %vm325 = vcmp.lt.s32.totalorder %v324, 32
    %v326 = vsub.f32 %v315, %v321
    %v327 = vsub.f32 %v316, %v322
    %v328 = vsel %vm325, %v326, 0.0
    %v329 = vsel %vm325, %v327, 0.0
    %v330 = vmul.f32 %v328, %v328
    %v331 = vmul.f32 %v329, %v329
    %332 = vadd.xlane.f32.xlu0 %v330
    %v333 = vpop.xlane.xlu0 %332
    %334 = vadd.xlane.f32.xlu0 %v331
    %v335 = vpop.xlane.xlu0 %334
    %v336 = vmul.f32 %v333, 0.03125
    %v337 = vmul.f32 %v335, 0.03125
    %v338 = vadd.f32 %v336, 1e-05
    %v339 = vadd.f32 %v337, 1e-05
    %v340 = vrsqrt.pop %v338
    %v341 = vrsqrt.pop %v339
    %v342 = vmul.f32 %v328, %v340
    %v343 = vmul.f32 %v329, %v341
    %v344 = vld [vmem:[%s5] sm:$0x1]
    %v346 = vlaneseq
    %v347 = vshrl.u32 %v346, 7
    %v348 = vsub.s32 0, %v347
    %v349 = vrot.slane %v344, %v348
    %v351 = vmul.f32 %v342, %v349
    %v352 = vmul.f32 %v343, %v349
    %v353 = vld [vmem:[%s6] sm:$0x1]
    %v355 = vlaneseq
    %v356 = vshrl.u32 %v355, 7
    %v357 = vsub.s32 0, %v356
    %v358 = vrot.slane %v353, %v357
    %v360 = vadd.f32 %v351, %v358
    %v361 = vadd.f32 %v352, %v358
    %362 = vst [vmem:[#allocation10] sm:$0xff] %v360
    %363 = vst [vmem:[#allocation10 + $0x8] sm:$0xff] %v361
    // Predicated region
    $region42: #{tpu_custom_call.1} parent=1 // pred_check
      _
    $region43: #{tpu_custom_call.1} parent=1 // pred_check_branch
      %365 = sbr.rel (0) target = $region45
    $region44: #{tpu_custom_call.1} parent=1 // pred_region
      %s367 = ssub.s32 256, 256
      %368 = vsyncadd [#allocation6], %s367
      %s369 = sshll.u32 [#allocation10], 4
      %s370 = int_to_ptr.vmem [resolvable:$true] %s369
      %375 = dma.vmem_to_hbm [thread:$0]  %s370, 256, %s7, [#allocation6], 128, 128, 8
    $region45: #{tpu_custom_call.1} parent=1 // pred_fallthru
      _
    // Predicated region
    $region46: #{tpu_custom_call.1} parent=1 // pred_check
      _
    $region47: #{tpu_custom_call.1} parent=1 // pred_check_branch
      %377 = sbr.rel (0) target = $region49
    $region48: #{tpu_custom_call.1} parent=1 // pred_region
      %378 = dma.done [#allocation6], 256
    $region49: #{tpu_custom_call.1} parent=1 // pred_fallthru
      _
    %379 = vsyncpa [#allocation5], 1
    %380 = vsyncpa [#allocation8], 1
    %381 = vsyncpa [#allocation6], 1

</llo_original>
